<compile_context>
chip_gen: v7x
topology: tpu7x:2x2x1
jax: 0.10.0
libtpu: 0.0.40
codegen_flags: <defaults>
</compile_context>

<pallas_src>
import jax
import jax.numpy as jnp
from jax.experimental import pallas as pl
from jax.experimental.pallas import tpu as pltpu


def _discriminator_kernel(x_ref, w1_ref, b1_ref, w2_ref, b2_ref, o_ref):
    """One batch tile.

    x_ref : (TB, F)     f32   -- streamed per grid step (cast to bf16 in-kernel)
    w1_ref: (F, H)      bf16  -- resident across the grid
    b1_ref: (1, H)      f32   -- resident
    w2_ref: (1, 1, H)   f32   -- second Linear's weight row, resident
    b2_ref: (1,)        f32   -- SMEM scalar
    o_ref : (G, 1, 128) f32   -- lane-dense: 128 batch rows per group on lanes
    """
    g = o_ref.shape[0]
    h_dim = w1_ref.shape[1]

    # In-kernel bf16 cast of x: avoids a standalone XLA cast (extra HBM round
    # trip); the VPU cast hides under the tile DMA.
    xb = x_ref[...].astype(jnp.bfloat16)

    # hidden = ReLU(x @ W1 + b1): bf16 MXU matmul, f32 accumulation.
    h = jnp.dot(xb, w1_ref[...], preferred_element_type=jnp.float32)   # (TB, H)
    h = jnp.maximum(h + b1_ref[...], 0.0)

    # Lane-dense tail: view the tile as G groups of 128 rows (minor dim of h is
    # unchanged, so this is a cheap layout-preserving reshape) and contract the
    # hidden dim on the MXU so each group's 128 batch rows land on lanes.
    h3 = h.reshape(g, 128, h_dim)                                      # (G,128,H)
    w2b = jnp.broadcast_to(w2_ref[...], (g, 1, h_dim))                 # (G,1,H)
    y = jnp.einsum("god,gjd->goj", w2b, h3,
                   preferred_element_type=jnp.float32)                 # (G,1,128)
    y = y + b2_ref[0]

    # sigmoid(y) = 1 / (1 + exp(-y)); exp and the approximate reciprocal both
    # ride the EUP slot and now act on lane-dense vregs.
    o_ref[...] = pl.reciprocal(1.0 + jnp.exp(-y), approx=True).astype(o_ref.dtype)


def discriminator_forward(x, w1, b1, w2, b2, *, block_rows=8192):
    """x: (B, F) f32 -> (B, 1) f32.

    w1: (F, H), b1: (1, H), w2: (1, H), b2: (1,).
    The batch is tiled into `block_rows`-row chunks (multiple of 128) so the x
    stream is pipelined (double-buffered) and the grid axis is "parallel".
    """
    B, F = x.shape
    H = w1.shape[1]

    x = x.astype(jnp.float32)            # streamed as f32; bf16 cast happens in-kernel
    w1 = w1.astype(jnp.bfloat16)         # resident, tiny -> cheap one-time cast
    b1 = b1.astype(jnp.float32)
    w2 = w2.astype(jnp.float32).reshape(1, 1, H)
    b2 = b2.astype(jnp.float32)

    # Batch tile: multiple of 128 rows (each group of 128 rows becomes the lane
    # dim of one output row).  Default 8192 rows (~4 MiB f32 x tile) amortizes
    # the ~0.35 us per-grid-step overhead to <10% of the tile DMA time.
    tb = max(128, (block_rows // 128) * 128)
    # Keep the grid length >= 2 when the batch allows it so both TensorCores
    # get work on v7x under dimension_semantics=("parallel",).
    if B > 128:
        half = (((B + 1) // 2) + 127) // 128 * 128
        tb = min(tb, half)

    n_steps = pl.cdiv(B, tb)
    g = tb // 128                  # output groups per grid step
    g_total = n_steps * g          # padded output groups (>= ceil(B / 128))

    flops = 2 * B * F * H + 2 * B * H
    bytes_accessed = (B * F * 4 + g_total * 128 * 4
                      + F * H * 2 + H * 4 + H * 4 + 4)

    out = pl.pallas_call(
        _discriminator_kernel,
        out_shape=jax.ShapeDtypeStruct((g_total, 1, 128), jnp.float32),
        grid_spec=pltpu.PrefetchScalarGridSpec(
            num_scalar_prefetch=0,
            grid=(n_steps,),
            in_specs=[
                pl.BlockSpec((tb, F), lambda i: (i, 0)),            # x : streamed
                pl.BlockSpec((F, H), lambda i: (0, 0)),             # W1: resident
                pl.BlockSpec((1, H), lambda i: (0, 0)),             # b1: resident
                pl.BlockSpec((1, 1, H), lambda i: (0, 0, 0)),       # w2: resident
                pl.BlockSpec(memory_space=pltpu.MemorySpace.SMEM),  # b2: SMEM scalar
            ],
            out_specs=pl.BlockSpec((g, 1, 128), lambda i: (i, 0, 0)),
        ),
        compiler_params=pltpu.CompilerParams(
            # Batch tiles are independent (no reduction axis) -> shard across TCs.
            dimension_semantics=("parallel",),
            # Large tiles exceed the 16 MiB default scoped VMEM on v5e; 48 MiB
            # still leaves headroom under v7x's 64 MiB physical VMEM.
            vmem_limit_bytes=48 * 1024 * 1024,
        ),
        cost_estimate=pl.CostEstimate(
            flops=int(flops),
            transcendentals=int(B),
            bytes_accessed=int(bytes_accessed)),
    )(x, w1, b1, w2, b2)

    # Lane-dense slab -> (B, 1).  Contiguous row-major, so the reshape is free
    # and the slice is a no-op whenever B is a multiple of the tile size.
    return out.reshape(g_total * 128, 1)[:B]


def init_params(key):
    """PyTorch nn.Linear-style init: U(-1/sqrt(fan_in), +1/sqrt(fan_in))."""
    k1, k2, k3, k4 = jax.random.split(key, 4)
    bound1 = 1.0 / jnp.sqrt(128.0)
    bound2 = 1.0 / jnp.sqrt(64.0)
    w1 = jax.random.uniform(k1, (128, 64), jnp.float32, -bound1, bound1)
    b1 = jax.random.uniform(k2, (1, 64), jnp.float32, -bound1, bound1)
    w2 = jax.random.uniform(k3, (1, 64), jnp.float32, -bound2, bound2)
    b2 = jax.random.uniform(k4, (1,), jnp.float32, -bound2, bound2)
    return w1, b1, w2, b2


if __name__ == "__main__":
    key = jax.random.PRNGKey(0)
    k_x, k_p = jax.random.split(key)

    B = 1024
    x = jax.random.normal(k_x, (B, 128), jnp.float32)
    w1, b1, w2, b2 = init_params(k_p)

    # Small block_rows so the demo exercises a multi-step, pipelined grid
    # (B=1024, tb=256 -> 4 grid steps, 2 output groups per step).
    out = discriminator_forward(x, w1, b1, w2, b2, block_rows=256)
    out = jax.block_until_ready(out)

    # Pure-JAX reference (same bf16 rounding of x / W1 as the kernel).
    xb = x.astype(jnp.bfloat16).astype(jnp.float32)
    w1b = w1.astype(jnp.bfloat16).astype(jnp.float32)
    h = jnp.maximum(xb @ w1b + b1, 0.0)
    ref = jax.nn.sigmoid(jnp.sum(h * w2, axis=-1, keepdims=True) + b2)

    assert out.shape == (B, 1)
    assert jnp.allclose(out, ref, atol=2e-3, rtol=2e-3), float(
        jnp.max(jnp.abs(out - ref)))

    print("KERNEL_OK")
</pallas_src>

<mosaic_0001>
module attributes {stable_mosaic.version = 11 : i64} {
  func.func @_discriminator_kernel(%arg0: i32, %arg1: memref<256x128xf32, #tpu.memory_space<vmem>>, %arg2: memref<128x64xbf16, #tpu.memory_space<vmem>>, %arg3: memref<1x64xf32, #tpu.memory_space<vmem>>, %arg4: memref<1x1x64xf32, #tpu.memory_space<vmem>>, %arg5: memref<1xf32, #tpu.memory_space<smem>>, %arg6: memref<2x1x128xf32, #tpu.memory_space<vmem>>) attributes {dimension_semantics = [#tpu.dimension_semantics<parallel>], iteration_bounds = array<i64: 4>, scalar_prefetch = 0 : i64, scratch_operands = 0 : i64, tpu.core_type = #tpu.core_type<tc>, window_params = [{transform_indices = @transform_0, window_bounds = array<i64: 256, 128>}, {pipeline_mode = #tpu.pipeline_mode<synchronous>, transform_indices = @transform_1, window_bounds = array<i64: 128, 64>}, {pipeline_mode = #tpu.pipeline_mode<synchronous>, transform_indices = @transform_2, window_bounds = array<i64: 1, 64>}, {pipeline_mode = #tpu.pipeline_mode<synchronous>, transform_indices = @transform_3, window_bounds = array<i64: 1, 1, 64>}, {transform_indices = @transform_4, window_bounds = array<i64: 1>}, {transform_indices = @transform_5, window_bounds = array<i64: 2, 1, 128>}]} {
    %c0 = arith.constant 0 : index
    %c0_0 = arith.constant 0 : index
    %0 = vector.load %arg1[%c0, %c0_0] : memref<256x128xf32, #tpu.memory_space<vmem>>, vector<256x128xf32>
    %1 = arith.truncf %0 : vector<256x128xf32> to vector<256x128xbf16>
    %c0_1 = arith.constant 0 : index
    %c0_2 = arith.constant 0 : index
    %2 = vector.load %arg2[%c0_1, %c0_2] : memref<128x64xbf16, #tpu.memory_space<vmem>>, vector<128x64xbf16>
    %cst = arith.constant dense<0.000000e+00> : vector<256x64xf32>
    %3 = tpu.matmul %1, %2, %cst {dimension_numbers = #tpu.dot_dimension_numbers<[1], [0], [0], [1], [0, 0, 1, 1], [], []>} : vector<256x128xbf16>, vector<128x64xbf16>, vector<256x64xf32> -> vector<256x64xf32>
    %c0_3 = arith.constant 0 : index
    %c0_4 = arith.constant 0 : index
    %4 = vector.load %arg3[%c0_3, %c0_4] : memref<1x64xf32, #tpu.memory_space<vmem>>, vector<1x64xf32>
    %5 = vector.broadcast %4 : vector<1x64xf32> to vector<256x64xf32>
    %6 = arith.addf %3, %5 : vector<256x64xf32>
    %cst_5 = arith.constant 0.000000e+00 : f32
    %7 = vector.broadcast %cst_5 : f32 to vector<256x64xf32>
    %8 = arith.maximumf %6, %7 : vector<256x64xf32>
    %9 = vector.shape_cast %8 : vector<256x64xf32> to vector<2x128x64xf32>
    %c0_6 = arith.constant 0 : index
    %c0_7 = arith.constant 0 : index
    %c0_8 = arith.constant 0 : index
    %10 = vector.load %arg4[%c0_6, %c0_7, %c0_8] : memref<1x1x64xf32, #tpu.memory_space<vmem>>, vector<1x1x64xf32>
    %11 = vector.shape_cast %10 : vector<1x1x64xf32> to vector<1x1x64xf32>
    %12 = vector.broadcast %11 : vector<1x1x64xf32> to vector<2x1x64xf32>
    "tpu.trace_start"() <{level = 10 : i32, message = "god,gjd->goj"}> : () -> ()
    %cst_9 = arith.constant dense<0.000000e+00> : vector<2x1x128xf32>
    %13 = tpu.matmul %12, %9, %cst_9 {dimension_numbers = #tpu.dot_dimension_numbers<[2], [2], [1], [1], [0, 0, 0, 1, 1, 1], [0], [0]>} : vector<2x1x64xf32>, vector<2x128x64xf32>, vector<2x1x128xf32> -> vector<2x1x128xf32>
    "tpu.trace_stop"() : () -> ()
    %c0_10 = arith.constant 0 : index
    %14 = memref.load %arg5[%c0_10] : memref<1xf32, #tpu.memory_space<smem>>
    %15 = vector.broadcast %14 : f32 to vector<2x1x128xf32>
    %16 = arith.addf %13, %15 : vector<2x1x128xf32>
    %cst_11 = arith.constant 0.000000e+00 : f32
    %17 = vector.broadcast %cst_11 : f32 to vector<2x1x128xf32>
    %18 = arith.subf %17, %16 : vector<2x1x128xf32>
    %19 = math.exp %18 : vector<2x1x128xf32>
    %cst_12 = arith.constant 1.000000e+00 : f32
    %20 = vector.broadcast %cst_12 : f32 to vector<2x1x128xf32>
    %21 = arith.addf %20, %19 : vector<2x1x128xf32>
    %22 = tpu.reciprocal %21 {approx = true} : vector<2x1x128xf32> -> vector<2x1x128xf32>
    %c0_13 = arith.constant 0 : index
    %c0_14 = arith.constant 0 : index
    %c0_15 = arith.constant 0 : index
    %23 = vector.load %arg6[%c0_13, %c0_14, %c0_15] : memref<2x1x128xf32, #tpu.memory_space<vmem>>, vector<2x1x128xf32>
    tpu.vector_store %arg6[%c0_13, %c0_14, %c0_15], %22 {strides = array<i32>} : memref<2x1x128xf32, #tpu.memory_space<vmem>>, vector<2x1x128xf32>,
    return
  }
  func.func @transform_0(%arg0: i32) -> (i32, i32) {
    %c0_i32 = arith.constant 0 : i32
    %c0_i32_0 = arith.constant 0 : i32
    return %arg0, %c0_i32 : i32, i32
  }
  func.func @transform_1(%arg0: i32) -> (i32, i32) {
    %c0_i32 = arith.constant 0 : i32
    %c0_i32_0 = arith.constant 0 : i32
    %c0_i32_1 = arith.constant 0 : i32
    return %c0_i32, %c0_i32_0 : i32, i32
  }
  func.func @transform_2(%arg0: i32) -> (i32, i32) {
    %c0_i32 = arith.constant 0 : i32
    %c0_i32_0 = arith.constant 0 : i32
    %c0_i32_1 = arith.constant 0 : i32
    return %c0_i32, %c0_i32_0 : i32, i32
  }
  func.func @transform_3(%arg0: i32) -> (i32, i32, i32) {
    %c0_i32 = arith.constant 0 : i32
    %c0_i32_0 = arith.constant 0 : i32
    %c0_i32_1 = arith.constant 0 : i32
    %c0_i32_2 = arith.constant 0 : i32
    return %c0_i32, %c0_i32_0, %c0_i32_1 : i32, i32, i32
  }
  func.func @transform_4(%arg0: i32) -> i32 {
    %c0_i32 = arith.constant 0 : i32
    %c0_i32_0 = arith.constant 0 : i32
    return %c0_i32 : i32
  }
  func.func @transform_5(%arg0: i32) -> (i32, i32, i32) {
    %c0_i32 = arith.constant 0 : i32
    %c0_i32_0 = arith.constant 0 : i32
    %c0_i32_1 = arith.constant 0 : i32
    return %arg0, %c0_i32, %c0_i32_0 : i32, i32, i32
  }
}

</mosaic_0001>

<llo_original>
// kernel: tpu_custom_call.1
$region0: #{tpu_custom_call.1}
  #allocation0 [shape = 'u32[]', space=smem, size = 0x4, offset = 0x4, fixed_abs, tag = 'smem constant byte address 0x4 - core index']
  #allocation1 [shape = 'u32[144,128]{1,0:T(1,128)}', space=vmem, size = 0x12000, scoped, tag = 'internal scratch']
  #allocation2 [shape = 'f32[1]{0:T(128)S(6)}', space=smem, size = 0x200, scoped, tag = 'scoped memory for tpu_custom_call.1']
  %s0 = inlined_call_operand.hbm [shape: f32[1024,128], index: 0, kind: input, shape index: {}]
  %s1 = inlined_call_operand.vmem [shape: bf16[128,64], index: 1, kind: input, shape index: {}]
  %s2 = inlined_call_operand.vmem [shape: f32[1,64], index: 2, kind: input, shape index: {}]
  %s3 = inlined_call_operand.vmem [shape: f32[1,1,64], index: 3, kind: input, shape index: {}]
  %s4 = inlined_call_operand.<no memory space> [shape: f32[1], index: 4, kind: input, shape index: {}]
  %s5 = inlined_call_operand.hbm [shape: f32[8,1,128], index: 5, kind: output, shape index: {}]
  %s6 = sld [smem:[#allocation0]]
  $region57: #{tpu_custom_call.1} parent=0
    _
  %s8 = ssub.s32 1, %s6
  %s9 = scalar_select 0, %s8, %s6
  %10 = sst [smem:[#allocation2]] %s4
  $region1: #{tpu_custom_call.1} parent=0
    #allocation3 [shape = 'u8[262144]{0}', space=vmem, size = 0x40000, scoped, tag = 'input window, operand 0']
    #allocation4 [shape = 's32[2]{0}', space=sflag, size = 0x8, scoped, tag = 'scoped memory for tpu_custom_call.1']
    #allocation5 [shape = 's32[2]{0}', space=sflag, size = 0x8, scoped, tag = 'scoped memory for tpu_custom_call.1']
    #allocation6 [shape = 'u8[2048]{0}', space=vmem, size = 0x800, scoped, tag = 'output window, operand 0']
    %11 = vsyncpa [#allocation4], 0
    %s12 = scalar_lea.sflag [#allocation4], 1
    %13 = vsyncpa %s12, 0
    %14 = vsyncpa [#allocation5], 0
    %s15 = scalar_lea.sflag [#allocation5], 1
    %16 = vsyncpa %s15, 0
    loop: start=0, step=1, limit=6
    $region2: #{tpu_custom_call.1} parent=1 // loop_pre_header
      _
    $region3: #{tpu_custom_call.1} parent=1 // loop_header
      %s18 = sphi 0, %s22
      %p19 = scmp.ge.s32.totalorder %s18, 6
      %s28 = sphi 0, %s30
      %s31 = sphi 0, %s28
      %s32 = sphi 0, %s31
      %s48 = sphi 0, %s32
      %s52 = sphi 0, %s52
      %s54 = sphi 0, %s52
      %s55 = sphi 0, %s54
      %s69 = sphi 0, %s55
      %s73 = sphi 0, %s73
      %s75 = sphi 0, %s73
      %s76 = sphi 0, %s75
      %s90 = sphi 0, %s76
      %s94 = sphi 0, %s94
      %s96 = sphi 0, %s94
      %s97 = sphi 0, %s96
      %s111 = sphi 0, %s97
      %s115 = sphi 0, %s115
      %s117 = sphi 0, %s115
      %s118 = sphi 0, %s117
      %s132 = sphi 0, %s118
      %s138 = sphi 0, %s140
      %s141 = sphi 0, %s138
      %s142 = sphi 0, %s141
      %s158 = sphi 0, %s142
    $region4: #{tpu_custom_call.1} parent=1 // loop_header_branch
      %21 = sbr.rel (%p19) target = $region8
    $region5: #{tpu_custom_call.1} parent=1 // loop_body
      %s23 = ssub.s32 %s18, 1
      %s24 = ssub.s32 %s18, 2
      %s25 = sadd.s32 %s18, 1
      %s26 = ssub.s32 %s18, %s25
      %p27 = scmp.eq.s32.totalorder %s26, 0
      %s29 = sadd.s32 %s28, 1
      %s30 = scalar_select %p27, %s28, %s29
      %p33 = pneg %p27
      %p34 = scmp.eq.s32.totalorder %s18, 3
      %p35 = por %p33, %p34
      %p36 = scmp.ne.s32.totalorder %s28, %s31
      %p37 = scmp.eq.s32.totalorder %s18, 0
      %p38 = por %p36, %p37
      %p39 = scmp.ne.s32.totalorder %s28, %s31
      %p40 = scmp.eq.s32.totalorder %s23, 3
      %p41 = por %p39, %p40
      %p42 = scmp.ne.s32.totalorder %s31, %s32
      %p43 = scmp.eq.s32.totalorder %s23, 0
      %p44 = por %p42, %p43
      %p45 = scmp.ne.s32.totalorder %s31, %s32
      %p46 = scmp.eq.s32.totalorder %s24, 3
      %p47 = por %p45, %p46
      %p49 = scmp.ne.s32.totalorder %s32, %s48
      %p50 = scmp.eq.s32.totalorder %s24, 0
      %p51 = por %p49, %p50
      %s53 = sadd.s32 %s52, 1
      %p56 = scmp.eq.s32.totalorder %s18, 3
      %p57 = scmp.ne.s32.totalorder %s52, %s54
      %p58 = scmp.eq.s32.totalorder %s18, 0
      %p59 = por %p57, %p58
      %p60 = scmp.ne.s32.totalorder %s52, %s54
      %p61 = scmp.eq.s32.totalorder %s23, 3
      %p62 = por %p60, %p61
      %p63 = scmp.ne.s32.totalorder %s54, %s55
      %p64 = scmp.eq.s32.totalorder %s23, 0
      %p65 = por %p63, %p64
      %p66 = scmp.ne.s32.totalorder %s54, %s55
      %p67 = scmp.eq.s32.totalorder %s24, 3
      %p68 = por %p66, %p67
      %p70 = scmp.ne.s32.totalorder %s55, %s69
      %p71 = scmp.eq.s32.totalorder %s24, 0
      %p72 = por %p70, %p71
      %s74 = sadd.s32 %s73, 1
      %p77 = scmp.eq.s32.totalorder %s18, 3
      %p78 = scmp.ne.s32.totalorder %s73, %s75
      %p79 = scmp.eq.s32.totalorder %s18, 0
      %p80 = por %p78, %p79
      %p81 = scmp.ne.s32.totalorder %s73, %s75
      %p82 = scmp.eq.s32.totalorder %s23, 3
      %p83 = por %p81, %p82
      %p84 = scmp.ne.s32.totalorder %s75, %s76
      %p85 = scmp.eq.s32.totalorder %s23, 0
      %p86 = por %p84, %p85
      %p87 = scmp.ne.s32.totalorder %s75, %s76
      %p88 = scmp.eq.s32.totalorder %s24, 3
      %p89 = por %p87, %p88
      %p91 = scmp.ne.s32.totalorder %s76, %s90
      %p92 = scmp.eq.s32.totalorder %s24, 0
      %p93 = por %p91, %p92
      %s95 = sadd.s32 %s94, 1
      %p98 = scmp.eq.s32.totalorder %s18, 3
      %p99 = scmp.ne.s32.totalorder %s94, %s96
      %p100 = scmp.eq.s32.totalorder %s18, 0
      %p101 = por %p99, %p100
      %p102 = scmp.ne.s32.totalorder %s94, %s96
      %p103 = scmp.eq.s32.totalorder %s23, 3
      %p104 = por %p102, %p103
      %p105 = scmp.ne.s32.totalorder %s96, %s97
      %p106 = scmp.eq.s32.totalorder %s23, 0
      %p107 = por %p105, %p106
      %p108 = scmp.ne.s32.totalorder %s96, %s97
      %p109 = scmp.eq.s32.totalorder %s24, 3
      %p110 = por %p108, %p109
      %p112 = scmp.ne.s32.totalorder %s97, %s111
      %p113 = scmp.eq.s32.totalorder %s24, 0
      %p114 = por %p112, %p113
      %s116 = sadd.s32 %s115, 1
      %p119 = scmp.eq.s32.totalorder %s18, 3
      %p120 = scmp.ne.s32.totalorder %s115, %s117
      %p121 = scmp.eq.s32.totalorder %s18, 0
      %p122 = por %p120, %p121
      %p123 = scmp.ne.s32.totalorder %s115, %s117
      %p124 = scmp.eq.s32.totalorder %s23, 3
      %p125 = por %p123, %p124
      %p126 = scmp.ne.s32.totalorder %s117, %s118
      %p127 = scmp.eq.s32.totalorder %s23, 0
      %p128 = por %p126, %p127
      %p129 = scmp.ne.s32.totalorder %s117, %s118
      %p130 = scmp.eq.s32.totalorder %s24, 3
      %p131 = por %p129, %p130
      %p133 = scmp.ne.s32.totalorder %s118, %s132
      %p134 = scmp.eq.s32.totalorder %s24, 0
      %p135 = por %p133, %p134
      %s136 = ssub.s32 %s18, %s25
      %p137 = scmp.eq.s32.totalorder %s136, 0
      %s139 = sadd.s32 %s138, 1
      %s140 = scalar_select %p137, %s138, %s139
      %p143 = pneg %p137
      %p144 = scmp.eq.s32.totalorder %s18, 3
      %p145 = por %p143, %p144
      %p146 = scmp.ne.s32.totalorder %s138, %s141
      %p147 = scmp.eq.s32.totalorder %s18, 0
      %p148 = por %p146, %p147
      %p149 = scmp.ne.s32.totalorder %s138, %s141
      %p150 = scmp.eq.s32.totalorder %s23, 3
      %p151 = por %p149, %p150
      %p152 = scmp.ne.s32.totalorder %s141, %s142
      %p153 = scmp.eq.s32.totalorder %s23, 0
      %p154 = por %p152, %p153
      %p155 = scmp.ne.s32.totalorder %s141, %s142
      %p156 = scmp.eq.s32.totalorder %s24, 3
      %p157 = por %p155, %p156
      %p159 = scmp.ne.s32.totalorder %s142, %s158
      %p160 = scmp.eq.s32.totalorder %s24, 0
      %p161 = por %p159, %p160
      %p162 = scmp.le.s32.totalorder 1, %s18
      %p163 = scmp.lt.s32.totalorder %s18, 5
      %p164 = pnand %p162, %p163
      %p165 = pneg %p164
      // Predicated region
      $region9: #{tpu_custom_call.1} parent=5 // pred_check
        _
      $region10: #{tpu_custom_call.1} parent=5 // pred_check_branch
        %167 = sbr.rel (%p164) target = $region12
      $region11: #{tpu_custom_call.1} parent=5 // pred_region
        %s168 = ssub.s32 %s18, 1
        // Predicated region
        $region13: #{tpu_custom_call.1} parent=11 // pred_check
          %p169 = pneg %p65
        $region14: #{tpu_custom_call.1} parent=11 // pred_check_branch
          %171 = sbr.rel (%p169) target = $region16
        $region15: #{tpu_custom_call.1} parent=11 // pred_region
          _
        $region16: #{tpu_custom_call.1} parent=11 // pred_fallthru
          _
        // Predicated region
        $region17: #{tpu_custom_call.1} parent=11 // pred_check
          %p172 = pneg %p86
        $region18: #{tpu_custom_call.1} parent=11 // pred_check_branch
          %174 = sbr.rel (%p172) target = $region20
        $region19: #{tpu_custom_call.1} parent=11 // pred_region
          _
        $region20: #{tpu_custom_call.1} parent=11 // pred_fallthru
          _
        // Predicated region
        $region21: #{tpu_custom_call.1} parent=11 // pred_check
          %p175 = pneg %p107
        $region22: #{tpu_custom_call.1} parent=11 // pred_check_branch
          %177 = sbr.rel (%p175) target = $region24
        $region23: #{tpu_custom_call.1} parent=11 // pred_region
          _
        $region24: #{tpu_custom_call.1} parent=11 // pred_fallthru
          _
        // Predicated region
        $region25: #{tpu_custom_call.1} parent=11 // pred_check
          %p178 = pneg %p128
        $region26: #{tpu_custom_call.1} parent=11 // pred_check_branch
          %180 = sbr.rel (%p178) target = $region28
        $region27: #{tpu_custom_call.1} parent=11 // pred_region
          _
        $region28: #{tpu_custom_call.1} parent=11 // pred_fallthru
          _
      $region12: #{tpu_custom_call.1} parent=5 // pred_fallthru
        _
      %p181 = scmp.lt.s32.totalorder %s18, 4
      // Predicated region
      $region29: #{tpu_custom_call.1} parent=5 // pred_check
        %p182 = pneg %p181
      $region30: #{tpu_custom_call.1} parent=5 // pred_check_branch
        %184 = sbr.rel (%p182) target = $region32
      $region31: #{tpu_custom_call.1} parent=5 // pred_region
        // Predicated region
        $region33: #{tpu_custom_call.1} parent=31 // pred_check
          %p185 = pneg %p38
        $region34: #{tpu_custom_call.1} parent=31 // pred_check_branch
          %187 = sbr.rel (%p185) target = $region36
        $region35: #{tpu_custom_call.1} parent=31 // pred_region
          %s188 = sand.u32 %s28, 1
          %s189 = scalar_lea.sflag [#allocation4], %s188
          %s190 = sand.u32 %s28, 1
          %s191 = smul.addr %s190, 256
          %s192 = scalar_lea.vmem [#allocation3], %s191
          %s193 = smul.u32 32, %s18
          %s195 = ssub.s32 4096, 4096
          %196 = vsyncadd %s189, %s195
          %s197 = smul.addr %s193, 128
          %s198 = scalar_lea.hbm %s0, %s197
          %s199 = sshll.u32 %s192, 4
          %s200 = int_to_ptr.vmem [resolvable:$true] %s199
          %205 = dma.hbm_to_vmem [thread:$0]  %s198, 4096, %s200, %s189, 128, 128, 8
        $region36: #{tpu_custom_call.1} parent=31 // pred_fallthru
          _
      $region32: #{tpu_custom_call.1} parent=5 // pred_fallthru
        _
      %p206 = scmp.le.s32.totalorder 1, %s18
      %p207 = scmp.lt.s32.totalorder %s18, 5
      %p208 = pnand %p206, %p207
      %p209 = pneg %p208
      // Predicated region
      $region37: #{tpu_custom_call.1} parent=5 // pred_check
        _
      $region38: #{tpu_custom_call.1} parent=5 // pred_check_branch
        %211 = sbr.rel (%p208) target = $region40
      $region39: #{tpu_custom_call.1} parent=5 // pred_region
        %s212 = ssub.s32 %s18, 1
        %s213 = sand.u32 %s31, 1
        %s214 = scalar_lea.sflag [#allocation4], %s213
        %s215 = sand.u32 %s31, 1
        %s216 = smul.addr %s215, 256
        %s217 = scalar_lea.vmem [#allocation3], %s216
        // Predicated region
        $region41: #{tpu_custom_call.1} parent=39 // pred_check
          %p218 = pneg %p44
        $region42: #{tpu_custom_call.1} parent=39 // pred_check_branch
          %220 = sbr.rel (%p218) target = $region44
        $region43: #{tpu_custom_call.1} parent=39 // pred_region
          %221 = dma.done %s214, 4096
        $region44: #{tpu_custom_call.1} parent=39 // pred_fallthru
          _
        %s222 = sand.u32 %s31, 1
        %s223 = scalar_lea.sflag [#allocation4], %s222
        %s224 = sand.u32 %s31, 1
        %s225 = smul.addr %s224, 256
        %s226 = scalar_lea.vmem [#allocation3], %s225
        %p227 = pneg %p44
        %p228 = pneg %p41
        %p229 = pneg %p65
        %p230 = pneg %p62
        %p231 = pneg %p86
        %p232 = pneg %p83
        %p233 = pneg %p107
        %p234 = pneg %p104
        %p235 = pneg %p128
        %p236 = pneg %p125
        %p237 = pneg %p154
        %p238 = pneg %p151
        %s239 = sand.u32 %s141, 1
        %s240 = scalar_lea.sflag [#allocation5], %s239
        %s241 = sand.u32 %s141, 1
        %s242 = smul.addr %s241, 2
        %s243 = scalar_lea.vmem [#allocation6], %s242
        %s244 = smul.u32 32, %s23
        %s245 = smul.u32 2, %s23
        %v247 = vld [vmem:[%s217] sm:$0xff]
        %v248 = vld [vmem:[%s217 + $0x8] sm:$0xff]
        %v249 = vld [vmem:[%s217 + $0x10] sm:$0xff]
        %v250 = vld [vmem:[%s217 + $0x18] sm:$0xff]
        %v251 = vld [vmem:[%s217 + $0x20] sm:$0xff]
        %v252 = vld [vmem:[%s217 + $0x28] sm:$0xff]
        %v253 = vld [vmem:[%s217 + $0x30] sm:$0xff]
        %v254 = vld [vmem:[%s217 + $0x38] sm:$0xff]
        %v255 = vld [vmem:[%s217 + $0x40] sm:$0xff]
        %v256 = vld [vmem:[%s217 + $0x48] sm:$0xff]
        %v257 = vld [vmem:[%s217 + $0x50] sm:$0xff]
        %v258 = vld [vmem:[%s217 + $0x58] sm:$0xff]
        %v259 = vld [vmem:[%s217 + $0x60] sm:$0xff]
        %v260 = vld [vmem:[%s217 + $0x68] sm:$0xff]
        %v261 = vld [vmem:[%s217 + $0x70] sm:$0xff]
        %v262 = vld [vmem:[%s217 + $0x78] sm:$0xff]
        %v263 = vld [vmem:[%s217 + $0x80] sm:$0xff]
        %v264 = vld [vmem:[%s217 + $0x88] sm:$0xff]
        %v265 = vld [vmem:[%s217 + $0x90] sm:$0xff]
        %v266 = vld [vmem:[%s217 + $0x98] sm:$0xff]
        %v267 = vld [vmem:[%s217 + $0xa0] sm:$0xff]
        %v268 = vld [vmem:[%s217 + $0xa8] sm:$0xff]
        %v269 = vld [vmem:[%s217 + $0xb0] sm:$0xff]
        %v270 = vld [vmem:[%s217 + $0xb8] sm:$0xff]
        %v271 = vld [vmem:[%s217 + $0xc0] sm:$0xff]
        %v272 = vld [vmem:[%s217 + $0xc8] sm:$0xff]
        %v273 = vld [vmem:[%s217 + $0xd0] sm:$0xff]
        %v274 = vld [vmem:[%s217 + $0xd8] sm:$0xff]
        %v275 = vld [vmem:[%s217 + $0xe0] sm:$0xff]
        %v276 = vld [vmem:[%s217 + $0xe8] sm:$0xff]
        %v277 = vld [vmem:[%s217 + $0xf0] sm:$0xff]
        %v278 = vld [vmem:[%s217 + $0xf8] sm:$0xff]
        %v279 = vpack.c.bf16 %v248, %v247
        %v280 = vpack.c.bf16 %v250, %v249
        %v281 = vpack.c.bf16 %v252, %v251
        %v282 = vpack.c.bf16 %v254, %v253
        %v283 = vpack.c.bf16 %v256, %v255
        %v284 = vpack.c.bf16 %v258, %v257
        %v285 = vpack.c.bf16 %v260, %v259
        %v286 = vpack.c.bf16 %v262, %v261
        %v287 = vpack.c.bf16 %v264, %v263
        %v288 = vpack.c.bf16 %v266, %v265
        %v289 = vpack.c.bf16 %v268, %v267
        %v290 = vpack.c.bf16 %v270, %v269
        %v291 = vpack.c.bf16 %v272, %v271
        %v292 = vpack.c.bf16 %v274, %v273
        %v293 = vpack.c.bf16 %v276, %v275
        %v294 = vpack.c.bf16 %v278, %v277
        %v295 = vld [vmem:[%s1] sm:$0xf]
        %v296 = vld [vmem:[%s1 + $0x4] sm:$0xf]
        %v297 = vld [vmem:[%s1 + $0x8] sm:$0xf]
        %v298 = vld [vmem:[%s1 + $0xc] sm:$0xf]
        %v299 = vld [vmem:[%s1 + $0x10] sm:$0xf]
        %v300 = vld [vmem:[%s1 + $0x14] sm:$0xf]
        %v301 = vld [vmem:[%s1 + $0x18] sm:$0xf]
        %v302 = vld [vmem:[%s1 + $0x1c] sm:$0xf]
        %v303 = vld [vmem:[%s1 + $0x20] sm:$0xf]
        %v304 = vld [vmem:[%s1 + $0x24] sm:$0xf]
        %v305 = vld [vmem:[%s1 + $0x28] sm:$0xf]
        %v306 = vld [vmem:[%s1 + $0x2c] sm:$0xf]
        %v307 = vld [vmem:[%s1 + $0x30] sm:$0xf]
        %v308 = vld [vmem:[%s1 + $0x34] sm:$0xf]
        %v309 = vld [vmem:[%s1 + $0x38] sm:$0xf]
        %v310 = vld [vmem:[%s1 + $0x3c] sm:$0xf]
        %v311 = vld [vmem:[%s2] sm:$0x1]
        %v313 = vlaneseq
        %v314 = vshrl.u32 %v313, 7
        %v315 = vsub.s32 0, %v314
        %v316 = vrot.slane %v311, %v315
        %v334 = vunpack.c.l.b16 %v295
        %v335 = vunpack.c.l.b16 %v296
        %v336 = vunpack.c.l.b16 %v297
        %v337 = vunpack.c.l.b16 %v298
        %v338 = vunpack.c.l.b16 %v299
        %v339 = vunpack.c.l.b16 %v300
        %v340 = vunpack.c.l.b16 %v301
        %v341 = vunpack.c.l.b16 %v302
        %v342 = vunpack.c.l.b16 %v303
        %v343 = vunpack.c.l.b16 %v304
        %v344 = vunpack.c.l.b16 %v305
        %v345 = vunpack.c.l.b16 %v306
        %v346 = vunpack.c.l.b16 %v307
        %v347 = vunpack.c.l.b16 %v308
        %v348 = vunpack.c.l.b16 %v309
        %v349 = vunpack.c.l.b16 %v310
        %v350 = vpack.c.b16 %v335, %v334
        %v351 = vpack.c.b16 %v337, %v336
        %v352 = vpack.c.b16 %v339, %v338
        %v353 = vpack.c.b16 %v341, %v340
        %v354 = vpack.c.b16 %v343, %v342
        %v355 = vpack.c.b16 %v345, %v344
        %v356 = vpack.c.b16 %v347, %v346
        %v357 = vpack.c.b16 %v349, %v348
        %366 = vmatprep.subr.bf16.mxu0 0
        %367 = vmatpush1.bf16.msra.mxu0 %v350
        %368 = vmatprep.subr.bf16.mxu0 0
        %369 = vmatpush1.bf16.msra.mxu0 %v351
        %370 = vmatprep.subr.bf16.mxu0 0
        %371 = vmatpush1.bf16.msra.mxu0 %v352
        %372 = vmatprep.subr.bf16.mxu0 0
        %373 = vmatpush1.bf16.msra.mxu0 %v353
        %374 = vmatprep.subr.bf16.mxu0 0
        %375 = vmatpush1.bf16.msra.mxu0 %v354
        %376 = vmatprep.subr.bf16.mxu0 0
        %377 = vmatpush1.bf16.msra.mxu0 %v355
        %378 = vmatprep.subr.bf16.mxu0 0
        %379 = vmatpush1.bf16.msra.mxu0 %v356
        %380 = vmatprep.subr.bf16.mxu0 0
        %381 = vmatpush1.bf16.msra.mxu0 %v357
        %382 = vmatprep.subr.bf16.mxu0 0
        %383 = vmatpush1.bf16.msra.mxu0 0
        %384 = vmatprep.subr.bf16.mxu0 0
        %385 = vmatpush1.bf16.msra.mxu0 0
        %386 = vmatprep.subr.bf16.mxu0 0
        %387 = vmatpush1.bf16.msra.mxu0 0
        %388 = vmatprep.subr.bf16.mxu0 0
        %389 = vmatpush1.bf16.msra.mxu0 0
        %390 = vmatprep.subr.bf16.mxu0 0
        %391 = vmatpush1.bf16.msra.mxu0 0
        %392 = vmatprep.subr.bf16.mxu0 0
        %393 = vmatpush1.bf16.msra.mxu0 0
        %394 = vmatprep.subr.bf16.mxu0 0
        %395 = vmatpush1.bf16.msra.mxu0 0
        %396 = vmatprep.subr.bf16.mxu0 0
        %397 = vmatpush1.bf16.msra.mxu0 0
        %398 = vmatprep.mubr.bf16.mxu0 0
        %399 = vmatmul.mubr.bf16.gmra.mrb[0].mxu0 %v279
        %v400 = vpop.f32.mrb[0].mxu0
        %v401 = vadd.f32 %v316, %v400
        %v402 = vpop.f32.mrb[0].mxu0
        %v403 = vpop.f32.mrb[0].mxu0
        %v404 = vadd.f32 %v316, %v403
        %v405 = vpop.f32.mrb[0].mxu0
        %406 = vmatprep.mubr.bf16.mxu0 0
        %407 = vmatmul.mubr.bf16.gmra.mrb[0].mxu0 %v280
        %v408 = vpop.f32.mrb[0].mxu0
        %v409 = vadd.f32 %v316, %v408
        %v410 = vpop.f32.mrb[0].mxu0
        %v411 = vpop.f32.mrb[0].mxu0
        %v412 = vadd.f32 %v316, %v411
        %v413 = vpop.f32.mrb[0].mxu0
        %414 = vmatprep.mubr.bf16.mxu0 0
        %415 = vmatmul.mubr.bf16.gmra.mrb[0].mxu0 %v281
        %v416 = vpop.f32.mrb[0].mxu0
        %v417 = vadd.f32 %v316, %v416
        %v418 = vpop.f32.mrb[0].mxu0
        %v419 = vpop.f32.mrb[0].mxu0
        %v420 = vadd.f32 %v316, %v419
        %v421 = vpop.f32.mrb[0].mxu0
        %422 = vmatprep.mubr.bf16.mxu0 0
        %423 = vmatmul.mubr.bf16.gmra.mrb[0].mxu0 %v282
        %v424 = vpop.f32.mrb[0].mxu0
        %v425 = vadd.f32 %v316, %v424
        %v426 = vpop.f32.mrb[0].mxu0
        %v427 = vpop.f32.mrb[0].mxu0
        %v428 = vadd.f32 %v316, %v427
        %v429 = vpop.f32.mrb[0].mxu0
        %430 = vmatprep.mubr.bf16.mxu0 0
        %431 = vmatmul.mubr.bf16.gmra.mrb[0].mxu0 %v283
        %v432 = vpop.f32.mrb[0].mxu0
        %v433 = vadd.f32 %v316, %v432
        %v434 = vpop.f32.mrb[0].mxu0
        %v435 = vpop.f32.mrb[0].mxu0
        %v436 = vadd.f32 %v316, %v435
        %v437 = vpop.f32.mrb[0].mxu0
        %438 = vmatprep.mubr.bf16.mxu0 0
        %439 = vmatmul.mubr.bf16.gmra.mrb[0].mxu0 %v284
        %v440 = vpop.f32.mrb[0].mxu0
        %v441 = vadd.f32 %v316, %v440
        %v442 = vpop.f32.mrb[0].mxu0
        %v443 = vpop.f32.mrb[0].mxu0
        %v444 = vadd.f32 %v316, %v443
        %v445 = vpop.f32.mrb[0].mxu0
        %446 = vmatprep.mubr.bf16.mxu0 0
        %447 = vmatmul.mubr.bf16.gmra.mrb[0].mxu0 %v285
        %v448 = vpop.f32.mrb[0].mxu0
        %v449 = vadd.f32 %v316, %v448
        %v450 = vpop.f32.mrb[0].mxu0
        %v451 = vpop.f32.mrb[0].mxu0
        %v452 = vadd.f32 %v316, %v451
        %v453 = vpop.f32.mrb[0].mxu0
        %454 = vmatprep.mubr.bf16.mxu0 0
        %455 = vmatmul.mubr.bf16.gmra.mrb[0].mxu0 %v286
        %v456 = vpop.f32.mrb[0].mxu0
        %v457 = vadd.f32 %v316, %v456
        %v458 = vpop.f32.mrb[0].mxu0
        %v459 = vpop.f32.mrb[0].mxu0
        %v460 = vadd.f32 %v316, %v459
        %v461 = vpop.f32.mrb[0].mxu0
        %462 = vmatprep.mubr.bf16.mxu0 0
        %463 = vmatmul.mubr.bf16.gmra.mrb[0].mxu0 %v287
        %v464 = vpop.f32.mrb[0].mxu0
        %v465 = vadd.f32 %v316, %v464
        %v466 = vpop.f32.mrb[0].mxu0
        %v467 = vpop.f32.mrb[0].mxu0
        %v468 = vadd.f32 %v316, %v467
        %v469 = vpop.f32.mrb[0].mxu0
        %470 = vmatprep.mubr.bf16.mxu0 0
        %471 = vmatmul.mubr.bf16.gmra.mrb[0].mxu0 %v288
        %v472 = vpop.f32.mrb[0].mxu0
        %v473 = vadd.f32 %v316, %v472
        %v474 = vpop.f32.mrb[0].mxu0
        %v475 = vpop.f32.mrb[0].mxu0
        %v476 = vadd.f32 %v316, %v475
        %v477 = vpop.f32.mrb[0].mxu0
        %478 = vmatprep.mubr.bf16.mxu0 0
        %479 = vmatmul.mubr.bf16.gmra.mrb[0].mxu0 %v289
        %v480 = vpop.f32.mrb[0].mxu0
        %v481 = vadd.f32 %v316, %v480
        %v482 = vpop.f32.mrb[0].mxu0
        %v483 = vpop.f32.mrb[0].mxu0
        %v484 = vadd.f32 %v316, %v483
        %v485 = vpop.f32.mrb[0].mxu0
        %486 = vmatprep.mubr.bf16.mxu0 0
        %487 = vmatmul.mubr.bf16.gmra.mrb[0].mxu0 %v290
        %v488 = vpop.f32.mrb[0].mxu0
        %v489 = vadd.f32 %v316, %v488
        %v490 = vpop.f32.mrb[0].mxu0
        %v491 = vpop.f32.mrb[0].mxu0
        %v492 = vadd.f32 %v316, %v491
        %v493 = vpop.f32.mrb[0].mxu0
        %494 = vmatprep.mubr.bf16.mxu0 0
        %495 = vmatmul.mubr.bf16.gmra.mrb[0].mxu0 %v291
        %v496 = vpop.f32.mrb[0].mxu0
        %v497 = vadd.f32 %v316, %v496
        %v498 = vpop.f32.mrb[0].mxu0
        %v499 = vpop.f32.mrb[0].mxu0
        %v500 = vadd.f32 %v316, %v499
        %v501 = vpop.f32.mrb[0].mxu0
        %502 = vmatprep.mubr.bf16.mxu0 0
        %503 = vmatmul.mubr.bf16.gmra.mrb[0].mxu0 %v292
        %v504 = vpop.f32.mrb[0].mxu0
        %v505 = vadd.f32 %v316, %v504
        %v506 = vpop.f32.mrb[0].mxu0
        %v507 = vpop.f32.mrb[0].mxu0
        %v508 = vadd.f32 %v316, %v507
        %v509 = vpop.f32.mrb[0].mxu0
        %510 = vmatprep.mubr.bf16.mxu0 0
        %511 = vmatmul.mubr.bf16.gmra.mrb[0].mxu0 %v293
        %v512 = vpop.f32.mrb[0].mxu0
        %v513 = vadd.f32 %v316, %v512
        %v514 = vpop.f32.mrb[0].mxu0
        %v515 = vpop.f32.mrb[0].mxu0
        %v516 = vadd.f32 %v316, %v515
        %v517 = vpop.f32.mrb[0].mxu0
        %518 = vmatprep.mubr.bf16.mxu0 0
        %519 = vmatmul.mubr.bf16.gmra.mrb[0].mxu0 %v294
        %v520 = vpop.f32.mrb[0].mxu0
        %v521 = vadd.f32 %v316, %v520
        %v522 = vpop.f32.mrb[0].mxu0
        %v523 = vpop.f32.mrb[0].mxu0
        %v524 = vadd.f32 %v316, %v523
        %v525 = vpop.f32.mrb[0].mxu0
        %526 = vdwg.mxu0
        %v527 = vmax.f32 %v401, 0.0
        %v528 = vmax.f32 %v404, 0.0
        %v529 = vmax.f32 %v409, 0.0
        %v530 = vmax.f32 %v412, 0.0
        %v531 = vmax.f32 %v417, 0.0
        %v532 = vmax.f32 %v420, 0.0
        %v533 = vmax.f32 %v425, 0.0
        %v534 = vmax.f32 %v428, 0.0
        %v535 = vmax.f32 %v433, 0.0
        %v536 = vmax.f32 %v436, 0.0
        %v537 = vmax.f32 %v441, 0.0
        %v538 = vmax.f32 %v444, 0.0
        %v539 = vmax.f32 %v449, 0.0
        %v540 = vmax.f32 %v452, 0.0
        %v541 = vmax.f32 %v457, 0.0
        %v542 = vmax.f32 %v460, 0.0
        %v543 = vmax.f32 %v465, 0.0
        %v544 = vmax.f32 %v468, 0.0
        %v545 = vmax.f32 %v473, 0.0
        %v546 = vmax.f32 %v476, 0.0
        %v547 = vmax.f32 %v481, 0.0
        %v548 = vmax.f32 %v484, 0.0
        %v549 = vmax.f32 %v489, 0.0
        %v550 = vmax.f32 %v492, 0.0
        %v551 = vmax.f32 %v497, 0.0
        %v552 = vmax.f32 %v500, 0.0
        %v553 = vmax.f32 %v505, 0.0
        %v554 = vmax.f32 %v508, 0.0
        %v555 = vmax.f32 %v513, 0.0
        %v556 = vmax.f32 %v516, 0.0
        %v557 = vmax.f32 %v521, 0.0
        %v558 = vmax.f32 %v524, 0.0
        %v559 = vld [vmem:[%s3] sm:$0x1]
        %s560 = sld [smem:[#allocation2]]
        %v561 = vstv %s560
        %vm562 = vcmask 523264
        %v564 = vsel %vm562, %v559, 0
        %v567 = vsel %vm562, %v527, 0
        %v570 = vsel %vm562, %v528, 0
        %v573 = vsel %vm562, %v529, 0
        %v576 = vsel %vm562, %v530, 0
        %v579 = vsel %vm562, %v531, 0
        %v582 = vsel %vm562, %v532, 0
        %v585 = vsel %vm562, %v533, 0
        %v588 = vsel %vm562, %v534, 0
        %v591 = vsel %vm562, %v535, 0
        %v594 = vsel %vm562, %v536, 0
        %v597 = vsel %vm562, %v537, 0
        %v600 = vsel %vm562, %v538, 0
        %v603 = vsel %vm562, %v539, 0
        %v606 = vsel %vm562, %v540, 0
        %v609 = vsel %vm562, %v541, 0
        %v612 = vsel %vm562, %v542, 0
        %614 = vmatprep.subr.mxu0 0.0
        %615 = vmatpush1.xpose.msra.mxu0 %v567
        %616 = vmatprep.subr.mxu0 0.0
        %617 = vmatpush1.xpose.msra.mxu0 %v570
        %618 = vmatprep.subr.mxu0 0.0
        %619 = vmatpush1.xpose.msra.mxu0 %v573
        %620 = vmatprep.subr.mxu0 0.0
        %621 = vmatpush1.xpose.msra.mxu0 %v576
        %622 = vmatprep.subr.mxu0 0.0
        %623 = vmatpush1.xpose.msra.mxu0 %v579
        %624 = vmatprep.subr.mxu0 0.0
        %625 = vmatpush1.xpose.msra.mxu0 %v582
        %626 = vmatprep.subr.mxu0 0.0
        %627 = vmatpush1.xpose.msra.mxu0 %v585
        %628 = vmatprep.subr.mxu0 0.0
        %629 = vmatpush1.xpose.msra.mxu0 %v588
        %630 = vmatprep.subr.mxu0 0.0
        %631 = vmatpush1.xpose.msra.mxu0 %v591
        %632 = vmatprep.subr.mxu0 0.0
        %633 = vmatpush1.xpose.msra.mxu0 %v594
        %634 = vmatprep.subr.mxu0 0.0
        %635 = vmatpush1.xpose.msra.mxu0 %v597
        %636 = vmatprep.subr.mxu0 0.0
        %637 = vmatpush1.xpose.msra.mxu0 %v600
        %638 = vmatprep.subr.mxu0 0.0
        %639 = vmatpush1.xpose.msra.mxu0 %v603
        %640 = vmatprep.subr.mxu0 0.0
        %641 = vmatpush1.xpose.msra.mxu0 %v606
        %642 = vmatprep.subr.mxu0 0.0
        %643 = vmatpush1.xpose.msra.mxu0 %v609
        %644 = vmatprep.subr.mxu0 0.0
        %645 = vmatpush1.xpose.msra.mxu0 %v612
        %646 = vmatprep.subr.mxu0 0.0
        %647 = vmatpush1.xpose.msra.mxu0 0.0
        %648 = vmatprep.subr.mxu0 0.0
        %649 = vmatpush1.xpose.msra.mxu0 0.0
        %650 = vmatprep.subr.mxu0 0.0
        %651 = vmatpush1.xpose.msra.mxu0 0.0
        %652 = vmatprep.subr.mxu0 0.0
        %653 = vmatpush1.xpose.msra.mxu0 0.0
        %654 = vmatprep.subr.mxu0 0.0
        %655 = vmatpush1.xpose.msra.mxu0 0.0
        %656 = vmatprep.subr.mxu0 0.0
        %657 = vmatpush1.xpose.msra.mxu0 0.0
        %658 = vmatprep.subr.mxu0 0.0
        %659 = vmatpush1.xpose.msra.mxu0 0.0
        %660 = vmatprep.subr.mxu0 0.0
        %661 = vmatpush1.xpose.msra.mxu0 0.0
        %662 = vmatprep.subr.mxu0 0.0
        %663 = vmatpush1.xpose.msra.mxu0 0.0
        %664 = vmatprep.subr.mxu0 0.0
        %665 = vmatpush1.xpose.msra.mxu0 0.0
        %666 = vmatprep.subr.mxu0 0.0
        %667 = vmatpush1.xpose.msra.mxu0 0.0
        %668 = vmatprep.subr.mxu0 0.0
        %669 = vmatpush1.xpose.msra.mxu0 0.0
        %670 = vmatprep.subr.mxu0 0.0
        %671 = vmatpush1.xpose.msra.mxu0 0.0
        %672 = vmatprep.subr.mxu0 0.0
        %673 = vmatpush1.xpose.msra.mxu0 0.0
        %674 = vmatprep.subr.mxu0 0.0
        %675 = vmatpush1.xpose.msra.mxu0 0.0
        %676 = vmatprep.subr.mxu0 0.0
        %677 = vmatpush1.xpose.msra.mxu0 0.0
        %678 = vmatprep.mubr.f32.mxu0 0.0
        %679 = vmatmul.mubr.f32.gmra.mrb[0].mxu0 %v564
        %v680 = vpop.f32.mrb[0].mxu0
        %v681 = vadd.f32 %v561, %v680
        %v682 = vpop.f32.mrb[0].mxu0
        %683 = vdwg.mxu0
        %v685 = vsel %vm562, %v543, 0
        %v688 = vsel %vm562, %v544, 0
        %v691 = vsel %vm562, %v545, 0
        %v694 = vsel %vm562, %v546, 0
        %v697 = vsel %vm562, %v547, 0
        %v700 = vsel %vm562, %v548, 0
        %v703 = vsel %vm562, %v549, 0
        %v706 = vsel %vm562, %v550, 0
        %v709 = vsel %vm562, %v551, 0
        %v712 = vsel %vm562, %v552, 0
        %v715 = vsel %vm562, %v553, 0
        %v718 = vsel %vm562, %v554, 0
        %v721 = vsel %vm562, %v555, 0
        %v724 = vsel %vm562, %v556, 0
        %v727 = vsel %vm562, %v557, 0
        %v730 = vsel %vm562, %v558, 0
        %732 = vmatprep.subr.mxu0 0.0
        %733 = vmatpush1.xpose.msra.mxu0 %v685
        %734 = vmatprep.subr.mxu0 0.0
        %735 = vmatpush1.xpose.msra.mxu0 %v688
        %736 = vmatprep.subr.mxu0 0.0
        %737 = vmatpush1.xpose.msra.mxu0 %v691
        %738 = vmatprep.subr.mxu0 0.0
        %739 = vmatpush1.xpose.msra.mxu0 %v694
        %740 = vmatprep.subr.mxu0 0.0
        %741 = vmatpush1.xpose.msra.mxu0 %v697
        %742 = vmatprep.subr.mxu0 0.0
        %743 = vmatpush1.xpose.msra.mxu0 %v700
        %744 = vmatprep.subr.mxu0 0.0
        %745 = vmatpush1.xpose.msra.mxu0 %v703
        %746 = vmatprep.subr.mxu0 0.0
        %747 = vmatpush1.xpose.msra.mxu0 %v706
        %748 = vmatprep.subr.mxu0 0.0
        %749 = vmatpush1.xpose.msra.mxu0 %v709
        %750 = vmatprep.subr.mxu0 0.0
        %751 = vmatpush1.xpose.msra.mxu0 %v712
        %752 = vmatprep.subr.mxu0 0.0
        %753 = vmatpush1.xpose.msra.mxu0 %v715
        %754 = vmatprep.subr.mxu0 0.0
        %755 = vmatpush1.xpose.msra.mxu0 %v718
        %756 = vmatprep.subr.mxu0 0.0
        %757 = vmatpush1.xpose.msra.mxu0 %v721
        %758 = vmatprep.subr.mxu0 0.0
        %759 = vmatpush1.xpose.msra.mxu0 %v724
        %760 = vmatprep.subr.mxu0 0.0
        %761 = vmatpush1.xpose.msra.mxu0 %v727
        %762 = vmatprep.subr.mxu0 0.0
        %763 = vmatpush1.xpose.msra.mxu0 %v730
        %764 = vmatprep.subr.mxu0 0.0
        %765 = vmatpush1.xpose.msra.mxu0 0.0
        %766 = vmatprep.subr.mxu0 0.0
        %767 = vmatpush1.xpose.msra.mxu0 0.0
        %768 = vmatprep.subr.mxu0 0.0
        %769 = vmatpush1.xpose.msra.mxu0 0.0
        %770 = vmatprep.subr.mxu0 0.0
        %771 = vmatpush1.xpose.msra.mxu0 0.0
        %772 = vmatprep.subr.mxu0 0.0
        %773 = vmatpush1.xpose.msra.mxu0 0.0
        %774 = vmatprep.subr.mxu0 0.0
        %775 = vmatpush1.xpose.msra.mxu0 0.0
        %776 = vmatprep.subr.mxu0 0.0
        %777 = vmatpush1.xpose.msra.mxu0 0.0
        %778 = vmatprep.subr.mxu0 0.0
        %779 = vmatpush1.xpose.msra.mxu0 0.0
        %780 = vmatprep.subr.mxu0 0.0
        %781 = vmatpush1.xpose.msra.mxu0 0.0
        %782 = vmatprep.subr.mxu0 0.0
        %783 = vmatpush1.xpose.msra.mxu0 0.0
        %784 = vmatprep.subr.mxu0 0.0
        %785 = vmatpush1.xpose.msra.mxu0 0.0
        %786 = vmatprep.subr.mxu0 0.0
        %787 = vmatpush1.xpose.msra.mxu0 0.0
        %788 = vmatprep.subr.mxu0 0.0
        %789 = vmatpush1.xpose.msra.mxu0 0.0
        %790 = vmatprep.subr.mxu0 0.0
        %791 = vmatpush1.xpose.msra.mxu0 0.0
        %792 = vmatprep.subr.mxu0 0.0
        %793 = vmatpush1.xpose.msra.mxu0 0.0
        %794 = vmatprep.subr.mxu0 0.0
        %795 = vmatpush1.xpose.msra.mxu0 0.0
        %796 = vmatprep.mubr.f32.mxu0 0.0
        %797 = vmatmul.mubr.f32.gmra.mrb[0].mxu0 %v564
        %v798 = vpop.f32.mrb[0].mxu0
        %v799 = vadd.f32 %v561, %v798
        %v800 = vpop.f32.mrb[0].mxu0
        %801 = vdwg.mxu0
        %v802 = vsub.f32 0.0, %v681
        %v803 = vsub.f32 0.0, %v799
        %v804 = vmul.f32 %v802, 1.442695
        %v805 = vpow.pop %v804
        %v806 = vmul.f32 %v803, 1.442695
        %v807 = vpow.pop %v806
        %v808 = vadd.f32 %v805, 1.0
        %v809 = vadd.f32 %v807, 1.0
        %v810 = vrcp.pop %v808
        %v811 = vrcp.pop %v809
        %812 = vst [vmem:[%s243] sm:$0x1] %v810
        %813 = vst [vmem:[%s243 + $0x1] sm:$0x1] %v811
        %s814 = sand.u32 %s141, 1
        %s815 = scalar_lea.sflag [#allocation5], %s814
        %s816 = sand.u32 %s141, 1
        %s817 = smul.addr %s816, 2
        %s818 = scalar_lea.vmem [#allocation6], %s817
        // Predicated region
        $region45: #{tpu_custom_call.1} parent=39 // pred_check
          %p819 = pneg %p151
        $region46: #{tpu_custom_call.1} parent=39 // pred_check_branch
          %821 = sbr.rel (%p819) target = $region48
        $region47: #{tpu_custom_call.1} parent=39 // pred_region
          %s822 = smul.u32 2, %s23
          %s824 = ssub.s32 32, 32
          %825 = vsyncadd %s815, %s824
          %s826 = smul.addr %s822, 16
          %s827 = scalar_lea.hbm %s5, %s826
          %s828 = sshll.u32 %s818, 4
          %s829 = int_to_ptr.vmem [resolvable:$true] %s828
          %834 = dma.vmem_to_hbm [thread:$0]  %s829, 32, %s827, %s815, 16, 16, 1
        $region48: #{tpu_custom_call.1} parent=39 // pred_fallthru
          _
      $region40: #{tpu_custom_call.1} parent=5 // pred_fallthru
        _
      %p835 = scmp.le.s32.totalorder 2, %s18
      // Predicated region
      $region49: #{tpu_custom_call.1} parent=5 // pred_check
        %p836 = pneg %p835
      $region50: #{tpu_custom_call.1} parent=5 // pred_check_branch
        %838 = sbr.rel (%p836) target = $region52
      $region51: #{tpu_custom_call.1} parent=5 // pred_region
        %s839 = ssub.s32 %s18, 2
        // Predicated region
        $region53: #{tpu_custom_call.1} parent=51 // pred_check
          %p840 = pneg %p157
        $region54: #{tpu_custom_call.1} parent=51 // pred_check_branch
          %842 = sbr.rel (%p840) target = $region56
        $region55: #{tpu_custom_call.1} parent=51 // pred_region
          %s843 = sand.u32 %s142, 1
          %s844 = scalar_lea.sflag [#allocation5], %s843
          %s845 = sand.u32 %s142, 1
          %s846 = smul.addr %s845, 2
          %s847 = scalar_lea.vmem [#allocation6], %s846
          %848 = dma.done %s844, 32
        $region56: #{tpu_custom_call.1} parent=51 // pred_fallthru
          _
      $region52: #{tpu_custom_call.1} parent=5 // pred_fallthru
        _
    $region6: #{tpu_custom_call.1} parent=1 // loop_footer
      %s22 = sadd.s32 1, %s18
    $region7: #{tpu_custom_call.1} parent=1 // loop_footer_branch
      %17 = sbr.rel target = $region3
    $region8: #{tpu_custom_call.1} parent=1 // loop_exit
      _
    %849 = vsyncpa [#allocation4], 1
    %s850 = scalar_lea.sflag [#allocation4], 1
    %851 = vsyncpa %s850, 1
    %852 = vsyncpa [#allocation5], 1
    %s853 = scalar_lea.sflag [#allocation5], 1
    %854 = vsyncpa %s853, 1

</llo_original>
